<compile_context>
chip_gen: v7x
topology: tpu7x:2x2x1
jax: 0.10.0
libtpu: 0.0.40
codegen_flags: <defaults>
</compile_context>

<pallas_src>
import jax
import jax.numpy as jnp
from jax.experimental import pallas as pl
from jax.experimental.pallas import tpu as pltpu

HIDDEN = 100           # logical hidden width (matches nn.Linear(D, 100))
HIDDEN_PAD = 128       # lane-aligned padded hidden width (zero padding)
DEFAULT_TILE_B = 4096  # batch rows per grid step (amortizes ~0.35us/step overhead)


def _round_up(n, m):
    return ((n + m - 1) // m) * m


def _discriminator_kernel(x_ref, w1_ref, b1_ref, w2_ref, b2_ref, w3_ref, b3_ref, o_ref):
    # Weights may be bf16 (MXU fast path); always accumulate in f32.
    mxu_dt = w1_ref.dtype
    x = x_ref[...].astype(mxu_dt)                                        # [TB, D]

    # Layer 1: Linear(D, 128pad) + LeakyReLU(0.1)
    h1 = jnp.dot(x, w1_ref[...], preferred_element_type=jnp.float32)    # [TB, 128]
    h1 = h1 + b1_ref[...]
    h1 = jnp.maximum(h1, 0.1 * h1)          # single VPU op (valid for 0 < slope < 1)

    # Layer 2: Linear(128pad, 128pad) + LeakyReLU(0.1)
    h2 = jnp.dot(h1.astype(mxu_dt), w2_ref[...], preferred_element_type=jnp.float32)
    h2 = h2 + b2_ref[...]
    h2 = jnp.maximum(h2, 0.1 * h2)                                        # [TB, 128]

    # Layer 3 on the MXU (it has slack): transposed contraction over the hidden
    # axis gives an already lane-dense [8, TB] result; only row 0 of w3 is
    # nonzero (rows 1..7 are zero padding), so row 0 holds the logits.
    logit8 = jax.lax.dot_general(
        w3_ref[...].astype(mxu_dt), h2.astype(mxu_dt),
        dimension_numbers=(((1,), (1,)), ((), ())),
        preferred_element_type=jnp.float32)                              # [8, TB]
    logit = logit8[0:1, :] + b3_ref[...]                                 # [1, TB]

    # Sigmoid, numerically stable, via one EUP tanh: sigmoid(x) = 0.5*(tanh(x/2)+1)
    prob = 0.5 * (jnp.tanh(0.5 * logit) + 1.0)                           # [1, TB]
    o_ref[...] = prob[None].astype(o_ref.dtype)                          # [1, 1, TB]


def _pad_params(params, mxu_dtype):
    """Zero-pad hidden width 100 -> 128; lay w3 out as an [8, 128] row block."""
    w1, b1, w2, b2, w3, b3 = (params[k] for k in ("w1", "b1", "w2", "b2", "w3", "b3"))
    pad_h = HIDDEN_PAD - HIDDEN
    w1p = jnp.pad(w1, ((0, 0), (0, pad_h)))                        # [D, 128]
    b1p = jnp.pad(b1.reshape(1, -1), ((0, 0), (0, pad_h)))         # [1, 128]
    w2p = jnp.pad(w2, ((0, pad_h), (0, pad_h)))                    # [128, 128]
    b2p = jnp.pad(b2.reshape(1, -1), ((0, 0), (0, pad_h)))         # [1, 128]
    w3p = jnp.pad(w3.reshape(1, -1), ((0, 7), (0, pad_h)))         # [8, 128], rows 1..7 zero
    b3p = b3.reshape(1, 1).astype(jnp.float32)                     # [1, 1]
    if mxu_dtype is not None:
        w1p = w1p.astype(mxu_dtype)
        w2p = w2p.astype(mxu_dtype)
        w3p = w3p.astype(mxu_dtype)
    return (w1p, b1p.astype(jnp.float32), w2p, b2p.astype(jnp.float32), w3p, b3p)


def _choose_tile_b(B, D, in_itemsize, requested):
    """Adaptive batch tile: big enough to amortize per-step overhead, small enough
    for v7x's 64 MiB VMEM, >= 2 grid steps when the batch allows it."""
    sub = 16 if in_itemsize < 4 else 8     # packed-sublane granule of the x block
    if B <= 2 * sub:
        return B                           # single full block (block == array dims)
    budget = 6 << 20                       # ~6 MiB for the double-buffered x tile
    cap = max(128, ((budget // max(1, 2 * D * in_itemsize)) // 128) * 128)
    tb = min(int(requested), cap)
    # >= 2 grid steps so ("parallel",) can shard across v7x's two TensorCores
    tb = min(tb, max(128, _round_up(pl.cdiv(B, 2), 128)))
    # never exceed the sublane-aligned batch
    tb = min(tb, (B // sub) * sub)
    return max(sub, (tb // sub) * sub)


def discriminator_forward(x, params, *, tile_b=DEFAULT_TILE_B, mxu_dtype=None):
    """x: [B, D] (f32 or bf16).  params: w1[D,100], b1[100], w2[100,100], b2[100],
    w3[100,1], b3[1].  Set mxu_dtype=jnp.bfloat16 for the bf16-weights /
    f32-accumulate MXU path; pass x already in bf16 from the producer to also
    halve the dominant x HBM read (no wrapper-side cast is performed)."""
    B, D = x.shape
    w1p, b1p, w2p, b2p, w3p, b3p = _pad_params(params, mxu_dtype)
    in_itemsize = jnp.dtype(x.dtype).itemsize

    tb = _choose_tile_b(B, D, in_itemsize, tile_b)
    num_tiles = pl.cdiv(B, tb)
    hp = HIDDEN_PAD

    wt_bytes = sum(int(a.size) * a.dtype.itemsize
                   for a in (w1p, b1p, w2p, b2p, w3p, b3p))
    needed = 2 * tb * D * in_itemsize + 2 * tb * 4 + 2 * wt_bytes + (2 << 20)
    vmem_limit = int(max(32 << 20, min(needed, 64 << 20)))

    def resident(shape):
        # Constant block index -> Pallas keeps this operand resident in VMEM.
        return pl.BlockSpec(shape, lambda i: (0,) * len(shape))

    cost = pl.CostEstimate(
        flops=2 * B * (D * hp + hp * hp + hp),
        transcendentals=B,
        bytes_accessed=B * D * in_itemsize + B * 4 + wt_bytes,
    )

    out = pl.pallas_call(
        _discriminator_kernel,
        out_shape=jax.ShapeDtypeStruct((num_tiles, 1, tb), jnp.float32),
        grid=(num_tiles,),
        in_specs=[
            pl.BlockSpec((tb, D), lambda i: (i, 0)),   # streamed batch tile (ragged last block OK)
            resident((D, hp)),                         # w1
            resident((1, hp)),                         # b1
            resident((hp, hp)),                        # w2
            resident((1, hp)),                         # b2
            resident((8, hp)),                         # w3 (row block, rows 1..7 zero)
            resident((1, 1)),                          # b3
        ],
        out_specs=pl.BlockSpec((1, 1, tb), lambda i: (i, 0, 0)),  # lane-dense output
        compiler_params=pltpu.CompilerParams(
            dimension_semantics=("parallel",),   # batch loop shards across v7x's 2 TCs
            vmem_limit_bytes=vmem_limit,
        ),
        cost_estimate=cost,
    )(x, w1p, b1p, w2p, b2p, w3p, b3p)

    # (num_tiles, 1, tb) -> (B, 1); trailing garbage lanes from the ragged last
    # block are dropped here (rows are independent, so they never contaminate
    # valid rows).
    return out.reshape(num_tiles * tb)[:B].reshape(B, 1)


def init_params(key, data_dimension):
    """PyTorch-Linear-style init: U(-1/sqrt(fan_in), 1/sqrt(fan_in)).
    Weights stored as [in_features, out_features] (== PyTorch W.T)."""
    ks = jax.random.split(key, 6)

    def lin(kw, kb, fan_in, fan_out):
        bound = 1.0 / jnp.sqrt(fan_in)
        w = jax.random.uniform(kw, (fan_in, fan_out), jnp.float32, -bound, bound)
        b = jax.random.uniform(kb, (fan_out,), jnp.float32, -bound, bound)
        return w, b

    w1, b1 = lin(ks[0], ks[1], data_dimension, HIDDEN)
    w2, b2 = lin(ks[2], ks[3], HIDDEN, HIDDEN)
    w3, b3 = lin(ks[4], ks[5], HIDDEN, 1)
    return {"w1": w1, "b1": b1, "w2": w2, "b2": b2, "w3": w3, "b3": b3}


def reference_forward(x, p):
    h1 = x @ p["w1"] + p["b1"]
    h1 = jnp.where(h1 >= 0, h1, 0.1 * h1)
    h2 = h1 @ p["w2"] + p["b2"]
    h2 = jnp.where(h2 >= 0, h2, 0.1 * h2)
    return jax.nn.sigmoid(h2 @ p["w3"] + p["b3"])


if __name__ == "__main__":
    key = jax.random.PRNGKey(0)
    k_x, k_p = jax.random.split(key)

    B, D = 200, 32  # small; B not tile-aligned to exercise the ragged last block
    x = jax.random.normal(k_x, (B, D), jnp.float32)
    params = init_params(k_p, D)
    ref = reference_forward(x, params)

    # f32 path: chooser yields tb=128, grid=(2,) -> exercises streaming, resident
    # weights, lane-dense output and the ragged last block.
    out = jax.block_until_ready(discriminator_forward(x, params))
    assert out.shape == (B, 1)
    # Tolerance accounts for MXU pass-granularity / summation-order differences
    # between the fused kernel (padded width, transposed layer-3) and XLA reference.
    assert jnp.allclose(out, ref, atol=2e-3, rtol=1e-3), float(jnp.max(jnp.abs(out - ref)))

    # bf16-MXU / f32-accumulate path: x supplied in bf16 by the "producer"
    # (no wrapper-side cast), looser tolerance for the input precision loss.
    x_bf = x.astype(jnp.bfloat16)
    out_bf = jax.block_until_ready(
        discriminator_forward(x_bf, params, mxu_dtype=jnp.bfloat16))
    assert out_bf.shape == (B, 1)
    assert jnp.allclose(out_bf, ref, atol=5e-2, rtol=5e-2), float(jnp.max(jnp.abs(out_bf - ref)))

    print("KERNEL_OK")
</pallas_src>

<mosaic_0001>
module attributes {stable_mosaic.version = 11 : i64} {
  func.func @_discriminator_kernel(%arg0: i32, %arg1: memref<128x32xf32, #tpu.memory_space<vmem>>, %arg2: memref<32x128xf32, #tpu.memory_space<vmem>>, %arg3: memref<1x128xf32, #tpu.memory_space<vmem>>, %arg4: memref<128x128xf32, #tpu.memory_space<vmem>>, %arg5: memref<1x128xf32, #tpu.memory_space<vmem>>, %arg6: memref<8x128xf32, #tpu.memory_space<vmem>>, %arg7: memref<1x1xf32, #tpu.memory_space<vmem>>, %arg8: memref<1x1x128xf32, #tpu.memory_space<vmem>>) attributes {dimension_semantics = [#tpu.dimension_semantics<parallel>], iteration_bounds = array<i64: 2>, scalar_prefetch = 0 : i64, scratch_operands = 0 : i64, tpu.core_type = #tpu.core_type<tc>, window_params = [{transform_indices = @transform_0, window_bounds = array<i64: 128, 32>}, {pipeline_mode = #tpu.pipeline_mode<synchronous>, transform_indices = @transform_1, window_bounds = array<i64: 32, 128>}, {pipeline_mode = #tpu.pipeline_mode<synchronous>, transform_indices = @transform_2, window_bounds = array<i64: 1, 128>}, {pipeline_mode = #tpu.pipeline_mode<synchronous>, transform_indices = @transform_3, window_bounds = array<i64: 128, 128>}, {pipeline_mode = #tpu.pipeline_mode<synchronous>, transform_indices = @transform_4, window_bounds = array<i64: 1, 128>}, {pipeline_mode = #tpu.pipeline_mode<synchronous>, transform_indices = @transform_5, window_bounds = array<i64: 8, 128>}, {pipeline_mode = #tpu.pipeline_mode<synchronous>, transform_indices = @transform_6, window_bounds = array<i64: 1, 1>}, {transform_indices = @transform_7, window_bounds = array<i64: 1, 1, 128>}]} {
    %c0 = arith.constant 0 : index
    %c0_0 = arith.constant 0 : index
    %0 = vector.load %arg1[%c0, %c0_0] : memref<128x32xf32, #tpu.memory_space<vmem>>, vector<128x32xf32>
    %c0_1 = arith.constant 0 : index
    %c0_2 = arith.constant 0 : index
    %1 = vector.load %arg2[%c0_1, %c0_2] : memref<32x128xf32, #tpu.memory_space<vmem>>, vector<32x128xf32>
    %cst = arith.constant dense<0.000000e+00> : vector<128x128xf32>
    %2 = tpu.matmul %0, %1, %cst {dimension_numbers = #tpu.dot_dimension_numbers<[1], [0], [0], [1], [0, 0, 1, 1], [], []>} : vector<128x32xf32>, vector<32x128xf32>, vector<128x128xf32> -> vector<128x128xf32>
    %c0_3 = arith.constant 0 : index
    %c0_4 = arith.constant 0 : index
    %3 = vector.load %arg3[%c0_3, %c0_4] : memref<1x128xf32, #tpu.memory_space<vmem>>, vector<1x128xf32>
    %4 = vector.broadcast %3 : vector<1x128xf32> to vector<128x128xf32>
    %5 = arith.addf %2, %4 : vector<128x128xf32>
    %cst_5 = arith.constant 1.000000e-01 : f32
    %6 = vector.broadcast %cst_5 : f32 to vector<128x128xf32>
    %7 = arith.mulf %6, %5 : vector<128x128xf32>
    %8 = arith.maximumf %5, %7 : vector<128x128xf32>
    %c0_6 = arith.constant 0 : index
    %c0_7 = arith.constant 0 : index
    %9 = vector.load %arg4[%c0_6, %c0_7] : memref<128x128xf32, #tpu.memory_space<vmem>>, vector<128x128xf32>
    %cst_8 = arith.constant dense<0.000000e+00> : vector<128x128xf32>
    %10 = tpu.matmul %8, %9, %cst_8 {dimension_numbers = #tpu.dot_dimension_numbers<[1], [0], [0], [1], [0, 0, 1, 1], [], []>} : vector<128x128xf32>, vector<128x128xf32>, vector<128x128xf32> -> vector<128x128xf32>
    %c0_9 = arith.constant 0 : index
    %c0_10 = arith.constant 0 : index
    %11 = vector.load %arg5[%c0_9, %c0_10] : memref<1x128xf32, #tpu.memory_space<vmem>>, vector<1x128xf32>
    %12 = vector.broadcast %11 : vector<1x128xf32> to vector<128x128xf32>
    %13 = arith.addf %10, %12 : vector<128x128xf32>
    %cst_11 = arith.constant 1.000000e-01 : f32
    %14 = vector.broadcast %cst_11 : f32 to vector<128x128xf32>
    %15 = arith.mulf %14, %13 : vector<128x128xf32>
    %16 = arith.maximumf %13, %15 : vector<128x128xf32>
    %c0_12 = arith.constant 0 : index
    %c0_13 = arith.constant 0 : index
    %17 = vector.load %arg6[%c0_12, %c0_13] : memref<8x128xf32, #tpu.memory_space<vmem>>, vector<8x128xf32>
    %cst_14 = arith.constant dense<0.000000e+00> : vector<8x128xf32>
    %18 = tpu.matmul %17, %16, %cst_14 {dimension_numbers = #tpu.dot_dimension_numbers<[1], [1], [0], [0], [0, 0, 1, 0], [], []>} : vector<8x128xf32>, vector<128x128xf32>, vector<8x128xf32> -> vector<8x128xf32>
    %19 = vector.extract_strided_slice %18 {offsets = [0, 0], sizes = [1, 128], strides = [1, 1]} : vector<8x128xf32> to vector<1x128xf32>
    %c0_15 = arith.constant 0 : index
    %c0_16 = arith.constant 0 : index
    %20 = vector.load %arg7[%c0_15, %c0_16] : memref<1x1xf32, #tpu.memory_space<vmem>>, vector<1x1xf32>
    %21 = vector.broadcast %20 : vector<1x1xf32> to vector<1x128xf32>
    %22 = arith.addf %19, %21 : vector<1x128xf32>
    %cst_17 = arith.constant 5.000000e-01 : f32
    %23 = vector.broadcast %cst_17 : f32 to vector<1x128xf32>
    %24 = arith.mulf %23, %22 : vector<1x128xf32>
    %25 = math.tanh %24 : vector<1x128xf32>
    %cst_18 = arith.constant 1.000000e+00 : f32
    %26 = vector.broadcast %cst_18 : f32 to vector<1x128xf32>
    %27 = arith.addf %25, %26 : vector<1x128xf32>
    %cst_19 = arith.constant 5.000000e-01 : f32
    %28 = vector.broadcast %cst_19 : f32 to vector<1x128xf32>
    %29 = arith.mulf %28, %27 : vector<1x128xf32>
    %30 = vector.shape_cast %29 : vector<1x128xf32> to vector<1x1x128xf32>
    %c0_20 = arith.constant 0 : index
    %c0_21 = arith.constant 0 : index
    %c0_22 = arith.constant 0 : index
    %31 = vector.load %arg8[%c0_20, %c0_21, %c0_22] : memref<1x1x128xf32, #tpu.memory_space<vmem>>, vector<1x1x128xf32>
    tpu.vector_store %arg8[%c0_20, %c0_21, %c0_22], %30 {strides = array<i32>} : memref<1x1x128xf32, #tpu.memory_space<vmem>>, vector<1x1x128xf32>,
    return
  }
  func.func @transform_0(%arg0: i32) -> (i32, i32) {
    %c0_i32 = arith.constant 0 : i32
    %c0_i32_0 = arith.constant 0 : i32
    return %arg0, %c0_i32 : i32, i32
  }
  func.func @transform_1(%arg0: i32) -> (i32, i32) {
    %c0_i32 = arith.constant 0 : i32
    %c0_i32_0 = arith.constant 0 : i32
    %c0_i32_1 = arith.constant 0 : i32
    return %c0_i32, %c0_i32_0 : i32, i32
  }
  func.func @transform_2(%arg0: i32) -> (i32, i32) {
    %c0_i32 = arith.constant 0 : i32
    %c0_i32_0 = arith.constant 0 : i32
    %c0_i32_1 = arith.constant 0 : i32
    return %c0_i32, %c0_i32_0 : i32, i32
  }
  func.func @transform_3(%arg0: i32) -> (i32, i32) {
    %c0_i32 = arith.constant 0 : i32
    %c0_i32_0 = arith.constant 0 : i32
    %c0_i32_1 = arith.constant 0 : i32
    return %c0_i32, %c0_i32_0 : i32, i32
  }
  func.func @transform_4(%arg0: i32) -> (i32, i32) {
    %c0_i32 = arith.constant 0 : i32
    %c0_i32_0 = arith.constant 0 : i32
    %c0_i32_1 = arith.constant 0 : i32
    return %c0_i32, %c0_i32_0 : i32, i32
  }
  func.func @transform_5(%arg0: i32) -> (i32, i32) {
    %c0_i32 = arith.constant 0 : i32
    %c0_i32_0 = arith.constant 0 : i32
    %c0_i32_1 = arith.constant 0 : i32
    return %c0_i32, %c0_i32_0 : i32, i32
  }
  func.func @transform_6(%arg0: i32) -> (i32, i32) {
    %c0_i32 = arith.constant 0 : i32
    %c0_i32_0 = arith.constant 0 : i32
    %c0_i32_1 = arith.constant 0 : i32
    return %c0_i32, %c0_i32_0 : i32, i32
  }
  func.func @transform_7(%arg0: i32) -> (i32, i32, i32) {
    %c0_i32 = arith.constant 0 : i32
    %c0_i32_0 = arith.constant 0 : i32
    %c0_i32_1 = arith.constant 0 : i32
    return %arg0, %c0_i32, %c0_i32_0 : i32, i32, i32
  }
}

</mosaic_0001>

<llo_original>
// kernel: tpu_custom_call.1
$region0: #{tpu_custom_call.1}
  #allocation0 [shape = 'u32[]', space=smem, size = 0x4, offset = 0x4, fixed_abs, tag = 'smem constant byte address 0x4 - core index']
  #allocation1 [shape = 'u32[144,128]{1,0:T(1,128)}', space=vmem, size = 0x12000, scoped, tag = 'internal scratch']
  #allocation2 [shape = 'f32[1,1]{1,0:T(1,128)S(1)}', space=vmem, size = 0x200, scoped, tag = 'scoped memory for tpu_custom_call.1']
  %s0 = inlined_call_operand.vmem [shape: f32[200,32], index: 0, kind: input, shape index: {}]
  %s1 = inlined_call_operand.vmem [shape: f32[32,128], index: 1, kind: input, shape index: {}]
  %s2 = inlined_call_operand.vmem [shape: f32[1,128], index: 2, kind: input, shape index: {}]
  %s3 = inlined_call_operand.vmem [shape: f32[128,128], index: 3, kind: input, shape index: {}]
  %s4 = inlined_call_operand.vmem [shape: f32[1,128], index: 4, kind: input, shape index: {}]
  %s5 = inlined_call_operand.vmem [shape: f32[8,128], index: 5, kind: input, shape index: {}]
  %s6 = inlined_call_operand.<no memory space> [shape: f32[1,1], index: 6, kind: input, shape index: {}]
  %s7 = inlined_call_operand.hbm [shape: f32[2,1,128], index: 7, kind: output, shape index: {}]
  %s8 = sld [smem:[#allocation0]]
  $region61: #{tpu_custom_call.1} parent=0
    _
  %s10 = ssub.s32 1, %s8
  %s11 = scalar_select 0, %s10, %s8
  %v12 = vstv %s6
  %13 = vst [vmem:[#allocation2] sm:$0x1] %v12
  $region1: #{tpu_custom_call.1} parent=0
    #allocation3 [shape = 'u8[1024]{0}', space=vmem, size = 0x400, scoped, tag = 'output window, operand 0']
    #allocation4 [shape = 's32[2]{0}', space=sflag, size = 0x8, scoped, tag = 'scoped memory for tpu_custom_call.1']
    %14 = vsyncpa [#allocation4], 0
    %s15 = scalar_lea.sflag [#allocation4], 1
    %16 = vsyncpa %s15, 0
    loop: start=0, step=1, limit=4
    $region2: #{tpu_custom_call.1} parent=1 // loop_pre_header
      _
    $region3: #{tpu_custom_call.1} parent=1 // loop_header
      %s18 = sphi 0, %s22
      %p19 = scmp.ge.s32.totalorder %s18, 4
      %s28 = sphi 0, %s30
      %s31 = sphi 0, %s28
      %s32 = sphi 0, %s31
      %s48 = sphi 0, %s32
      %s52 = sphi 0, %s52
      %s54 = sphi 0, %s52
      %s55 = sphi 0, %s54
      %s69 = sphi 0, %s55
      %s73 = sphi 0, %s73
      %s75 = sphi 0, %s73
      %s76 = sphi 0, %s75
      %s90 = sphi 0, %s76
      %s94 = sphi 0, %s94
      %s96 = sphi 0, %s94
      %s97 = sphi 0, %s96
      %s111 = sphi 0, %s97
      %s115 = sphi 0, %s115
      %s117 = sphi 0, %s115
      %s118 = sphi 0, %s117
      %s132 = sphi 0, %s118
      %s136 = sphi 0, %s136
      %s138 = sphi 0, %s136
      %s139 = sphi 0, %s138
      %s153 = sphi 0, %s139
      %s157 = sphi 0, %s157
      %s159 = sphi 0, %s157
      %s160 = sphi 0, %s159
      %s174 = sphi 0, %s160
      %s180 = sphi 0, %s182
      %s183 = sphi 0, %s180
      %s184 = sphi 0, %s183
      %s200 = sphi 0, %s184
    $region4: #{tpu_custom_call.1} parent=1 // loop_header_branch
      %21 = sbr.rel (%p19) target = $region8
    $region5: #{tpu_custom_call.1} parent=1 // loop_body
      %s23 = ssub.s32 %s18, 1
      %s24 = ssub.s32 %s18, 2
      %s25 = sadd.s32 %s18, 1
      %s26 = ssub.s32 %s18, %s25
      %p27 = scmp.eq.s32.totalorder %s26, 0
      %s29 = sadd.s32 %s28, 1
      %s30 = scalar_select %p27, %s28, %s29
      %p33 = pneg %p27
      %p34 = scmp.eq.s32.totalorder %s18, 1
      %p35 = por %p33, %p34
      %p36 = scmp.ne.s32.totalorder %s28, %s31
      %p37 = scmp.eq.s32.totalorder %s18, 0
      %p38 = por %p36, %p37
      %p39 = scmp.ne.s32.totalorder %s28, %s31
      %p40 = scmp.eq.s32.totalorder %s23, 1
      %p41 = por %p39, %p40
      %p42 = scmp.ne.s32.totalorder %s31, %s32
      %p43 = scmp.eq.s32.totalorder %s23, 0
      %p44 = por %p42, %p43
      %p45 = scmp.ne.s32.totalorder %s31, %s32
      %p46 = scmp.eq.s32.totalorder %s24, 1
      %p47 = por %p45, %p46
      %p49 = scmp.ne.s32.totalorder %s32, %s48
      %p50 = scmp.eq.s32.totalorder %s24, 0
      %p51 = por %p49, %p50
      %s53 = sadd.s32 %s52, 1
      %p56 = scmp.eq.s32.totalorder %s18, 1
      %p57 = scmp.ne.s32.totalorder %s52, %s54
      %p58 = scmp.eq.s32.totalorder %s18, 0
      %p59 = por %p57, %p58
      %p60 = scmp.ne.s32.totalorder %s52, %s54
      %p61 = scmp.eq.s32.totalorder %s23, 1
      %p62 = por %p60, %p61
      %p63 = scmp.ne.s32.totalorder %s54, %s55
      %p64 = scmp.eq.s32.totalorder %s23, 0
      %p65 = por %p63, %p64
      %p66 = scmp.ne.s32.totalorder %s54, %s55
      %p67 = scmp.eq.s32.totalorder %s24, 1
      %p68 = por %p66, %p67
      %p70 = scmp.ne.s32.totalorder %s55, %s69
      %p71 = scmp.eq.s32.totalorder %s24, 0
      %p72 = por %p70, %p71
      %s74 = sadd.s32 %s73, 1
      %p77 = scmp.eq.s32.totalorder %s18, 1
      %p78 = scmp.ne.s32.totalorder %s73, %s75
      %p79 = scmp.eq.s32.totalorder %s18, 0
      %p80 = por %p78, %p79
      %p81 = scmp.ne.s32.totalorder %s73, %s75
      %p82 = scmp.eq.s32.totalorder %s23, 1
      %p83 = por %p81, %p82
      %p84 = scmp.ne.s32.totalorder %s75, %s76
      %p85 = scmp.eq.s32.totalorder %s23, 0
      %p86 = por %p84, %p85
      %p87 = scmp.ne.s32.totalorder %s75, %s76
      %p88 = scmp.eq.s32.totalorder %s24, 1
      %p89 = por %p87, %p88
      %p91 = scmp.ne.s32.totalorder %s76, %s90
      %p92 = scmp.eq.s32.totalorder %s24, 0
      %p93 = por %p91, %p92
      %s95 = sadd.s32 %s94, 1
      %p98 = scmp.eq.s32.totalorder %s18, 1
      %p99 = scmp.ne.s32.totalorder %s94, %s96
      %p100 = scmp.eq.s32.totalorder %s18, 0
      %p101 = por %p99, %p100
      %p102 = scmp.ne.s32.totalorder %s94, %s96
      %p103 = scmp.eq.s32.totalorder %s23, 1
      %p104 = por %p102, %p103
      %p105 = scmp.ne.s32.totalorder %s96, %s97
      %p106 = scmp.eq.s32.totalorder %s23, 0
      %p107 = por %p105, %p106
      %p108 = scmp.ne.s32.totalorder %s96, %s97
      %p109 = scmp.eq.s32.totalorder %s24, 1
      %p110 = por %p108, %p109
      %p112 = scmp.ne.s32.totalorder %s97, %s111
      %p113 = scmp.eq.s32.totalorder %s24, 0
      %p114 = por %p112, %p113
      %s116 = sadd.s32 %s115, 1
      %p119 = scmp.eq.s32.totalorder %s18, 1
      %p120 = scmp.ne.s32.totalorder %s115, %s117
      %p121 = scmp.eq.s32.totalorder %s18, 0
      %p122 = por %p120, %p121
      %p123 = scmp.ne.s32.totalorder %s115, %s117
      %p124 = scmp.eq.s32.totalorder %s23, 1
      %p125 = por %p123, %p124
      %p126 = scmp.ne.s32.totalorder %s117, %s118
      %p127 = scmp.eq.s32.totalorder %s23, 0
      %p128 = por %p126, %p127
      %p129 = scmp.ne.s32.totalorder %s117, %s118
      %p130 = scmp.eq.s32.totalorder %s24, 1
      %p131 = por %p129, %p130
      %p133 = scmp.ne.s32.totalorder %s118, %s132
      %p134 = scmp.eq.s32.totalorder %s24, 0
      %p135 = por %p133, %p134
      %s137 = sadd.s32 %s136, 1
      %p140 = scmp.eq.s32.totalorder %s18, 1
      %p141 = scmp.ne.s32.totalorder %s136, %s138
      %p142 = scmp.eq.s32.totalorder %s18, 0
      %p143 = por %p141, %p142
      %p144 = scmp.ne.s32.totalorder %s136, %s138
      %p145 = scmp.eq.s32.totalorder %s23, 1
      %p146 = por %p144, %p145
      %p147 = scmp.ne.s32.totalorder %s138, %s139
      %p148 = scmp.eq.s32.totalorder %s23, 0
      %p149 = por %p147, %p148
      %p150 = scmp.ne.s32.totalorder %s138, %s139
      %p151 = scmp.eq.s32.totalorder %s24, 1
      %p152 = por %p150, %p151
      %p154 = scmp.ne.s32.totalorder %s139, %s153
      %p155 = scmp.eq.s32.totalorder %s24, 0
      %p156 = por %p154, %p155
      %s158 = sadd.s32 %s157, 1
      %p161 = scmp.eq.s32.totalorder %s18, 1
      %p162 = scmp.ne.s32.totalorder %s157, %s159
      %p163 = scmp.eq.s32.totalorder %s18, 0
      %p164 = por %p162, %p163
      %p165 = scmp.ne.s32.totalorder %s157, %s159
      %p166 = scmp.eq.s32.totalorder %s23, 1
      %p167 = por %p165, %p166
      %p168 = scmp.ne.s32.totalorder %s159, %s160
      %p169 = scmp.eq.s32.totalorder %s23, 0
      %p170 = por %p168, %p169
      %p171 = scmp.ne.s32.totalorder %s159, %s160
      %p172 = scmp.eq.s32.totalorder %s24, 1
      %p173 = por %p171, %p172
      %p175 = scmp.ne.s32.totalorder %s160, %s174
      %p176 = scmp.eq.s32.totalorder %s24, 0
      %p177 = por %p175, %p176
      %s178 = ssub.s32 %s18, %s25
      %p179 = scmp.eq.s32.totalorder %s178, 0
      %s181 = sadd.s32 %s180, 1
      %s182 = scalar_select %p179, %s180, %s181
      %p185 = pneg %p179
      %p186 = scmp.eq.s32.totalorder %s18, 1
      %p187 = por %p185, %p186
      %p188 = scmp.ne.s32.totalorder %s180, %s183
      %p189 = scmp.eq.s32.totalorder %s18, 0
      %p190 = por %p188, %p189
      %p191 = scmp.ne.s32.totalorder %s180, %s183
      %p192 = scmp.eq.s32.totalorder %s23, 1
      %p193 = por %p191, %p192
      %p194 = scmp.ne.s32.totalorder %s183, %s184
      %p195 = scmp.eq.s32.totalorder %s23, 0
      %p196 = por %p194, %p195
      %p197 = scmp.ne.s32.totalorder %s183, %s184
      %p198 = scmp.eq.s32.totalorder %s24, 1
      %p199 = por %p197, %p198
      %p201 = scmp.ne.s32.totalorder %s184, %s200
      %p202 = scmp.eq.s32.totalorder %s24, 0
      %p203 = por %p201, %p202
      %p204 = scmp.le.s32.totalorder 1, %s18
      %p205 = scmp.lt.s32.totalorder %s18, 3
      %p206 = pnand %p204, %p205
      %p207 = pneg %p206
      // Predicated region
      $region9: #{tpu_custom_call.1} parent=5 // pred_check
        _
      $region10: #{tpu_custom_call.1} parent=5 // pred_check_branch
        %209 = sbr.rel (%p206) target = $region12
      $region11: #{tpu_custom_call.1} parent=5 // pred_region
        %s210 = ssub.s32 %s18, 1
        // Predicated region
        $region13: #{tpu_custom_call.1} parent=11 // pred_check
          %p211 = pneg %p65
        $region14: #{tpu_custom_call.1} parent=11 // pred_check_branch
          %213 = sbr.rel (%p211) target = $region16
        $region15: #{tpu_custom_call.1} parent=11 // pred_region
          _
        $region16: #{tpu_custom_call.1} parent=11 // pred_fallthru
          _
        // Predicated region
        $region17: #{tpu_custom_call.1} parent=11 // pred_check
          %p214 = pneg %p86
        $region18: #{tpu_custom_call.1} parent=11 // pred_check_branch
          %216 = sbr.rel (%p214) target = $region20
        $region19: #{tpu_custom_call.1} parent=11 // pred_region
          _
        $region20: #{tpu_custom_call.1} parent=11 // pred_fallthru
          _
        // Predicated region
        $region21: #{tpu_custom_call.1} parent=11 // pred_check
          %p217 = pneg %p107
        $region22: #{tpu_custom_call.1} parent=11 // pred_check_branch
          %219 = sbr.rel (%p217) target = $region24
        $region23: #{tpu_custom_call.1} parent=11 // pred_region
          _
        $region24: #{tpu_custom_call.1} parent=11 // pred_fallthru
          _
        // Predicated region
        $region25: #{tpu_custom_call.1} parent=11 // pred_check
          %p220 = pneg %p128
        $region26: #{tpu_custom_call.1} parent=11 // pred_check_branch
          %222 = sbr.rel (%p220) target = $region28
        $region27: #{tpu_custom_call.1} parent=11 // pred_region
          _
        $region28: #{tpu_custom_call.1} parent=11 // pred_fallthru
          _
        // Predicated region
        $region29: #{tpu_custom_call.1} parent=11 // pred_check
          %p223 = pneg %p149
        $region30: #{tpu_custom_call.1} parent=11 // pred_check_branch
          %225 = sbr.rel (%p223) target = $region32
        $region31: #{tpu_custom_call.1} parent=11 // pred_region
          _
        $region32: #{tpu_custom_call.1} parent=11 // pred_fallthru
          _
        // Predicated region
        $region33: #{tpu_custom_call.1} parent=11 // pred_check
          %p226 = pneg %p170
        $region34: #{tpu_custom_call.1} parent=11 // pred_check_branch
          %228 = sbr.rel (%p226) target = $region36
        $region35: #{tpu_custom_call.1} parent=11 // pred_region
          _
        $region36: #{tpu_custom_call.1} parent=11 // pred_fallthru
          _
      $region12: #{tpu_custom_call.1} parent=5 // pred_fallthru
        _
      %p229 = scmp.lt.s32.totalorder %s18, 2
      // Predicated region
      $region37: #{tpu_custom_call.1} parent=5 // pred_check
        %p230 = pneg %p229
      $region38: #{tpu_custom_call.1} parent=5 // pred_check_branch
        %232 = sbr.rel (%p230) target = $region40
      $region39: #{tpu_custom_call.1} parent=5 // pred_region
        // Predicated region
        $region41: #{tpu_custom_call.1} parent=39 // pred_check
          %p233 = pneg %p38
        $region42: #{tpu_custom_call.1} parent=39 // pred_check_branch
          %235 = sbr.rel (%p233) target = $region44
        $region43: #{tpu_custom_call.1} parent=39 // pred_region
          %s236 = smul.u32 16, %s18
          %s237 = ssub.s32 25, %s236
          %p238 = scmp.lt.s32.totalorder %s237, 16
          %s239 = scalar_select %p238, %s237, 16
          %s240 = smul.u32 128, %s239
          %p241 = scmp.lt.s32.totalorder %s236, 24
          %s242 = scalar_select %p241, %s236, 24
          %s243 = smul.addr %s242, 8
          %s244 = scalar_lea.vmem %s0, %s243
          %s245 = smul.u32 16, %s18
          %s246 = ssub.s32 25, %s245
          %p247 = scmp.lt.s32.totalorder %s246, 16
          %s248 = scalar_select %p247, %s246, 16
          %s249 = smul.u32 128, %s248
        $region44: #{tpu_custom_call.1} parent=39 // pred_fallthru
          _
      $region40: #{tpu_custom_call.1} parent=5 // pred_fallthru
        _
      %p250 = scmp.le.s32.totalorder 1, %s18
      %p251 = scmp.lt.s32.totalorder %s18, 3
      %p252 = pnand %p250, %p251
      %p253 = pneg %p252
      // Predicated region
      $region45: #{tpu_custom_call.1} parent=5 // pred_check
        _
      $region46: #{tpu_custom_call.1} parent=5 // pred_check_branch
        %255 = sbr.rel (%p252) target = $region48
      $region47: #{tpu_custom_call.1} parent=5 // pred_region
        %s256 = ssub.s32 %s18, 1
        %s257 = smul.u32 16, %s23
        %s258 = ssub.s32 25, %s257
        %p259 = scmp.lt.s32.totalorder %s258, 16
        %s260 = scalar_select %p259, %s258, 16
        %s261 = smul.u32 128, %s260
        %p262 = scmp.lt.s32.totalorder %s257, 24
        %s263 = scalar_select %p262, %s257, 24
        %s264 = smul.addr %s263, 8
        %s265 = scalar_lea.vmem %s0, %s264
        %p266 = pneg %p44
        %p267 = pneg %p41
        %p268 = pneg %p65
        %p269 = pneg %p62
        %p270 = pneg %p86
        %p271 = pneg %p83
        %p272 = pneg %p107
        %p273 = pneg %p104
        %p274 = pneg %p128
        %p275 = pneg %p125
        %p276 = pneg %p149
        %p277 = pneg %p146
        %p278 = pneg %p170
        %p279 = pneg %p167
        %p280 = pneg %p196
        %p281 = pneg %p193
        %s282 = sand.u32 %s183, 1
        %s283 = scalar_lea.sflag [#allocation4], %s282
        %s284 = sand.u32 %s183, 1
        %s285 = scalar_lea.vmem [#allocation3], %s284
        %s286 = smul.u32 16, %s23
        %s287 = ssub.s32 25, %s286
        %p288 = scmp.lt.s32.totalorder %s287, 16
        %s289 = scalar_select %p288, %s287, 16
        %s290 = smul.u32 128, %s289
        %p291 = scmp.lt.s32.totalorder %s286, 24
        %s292 = scalar_select %p291, %s286, 24
        %s293 = smul.addr %s292, 8
        %s294 = scalar_lea.vmem %s0, %s293
        %s295 = smul.u32 16, %s23
        %s296 = ssub.s32 25, %s295
        %p297 = scmp.lt.s32.totalorder %s296, 16
        %s298 = scalar_select %p297, %s296, 16
        %s299 = smul.u32 128, %s298
        %v300 = vld [vmem:[%s294] sm:$0xff]
        %v301 = vld [vmem:[%s294 + $0x8] sm:$0xff]
        %v302 = vld [vmem:[%s294 + $0x10] sm:$0xff]
        %v303 = vld [vmem:[%s294 + $0x18] sm:$0xff]
        %v304 = vld [vmem:[%s294 + $0x20] sm:$0xff]
        %v305 = vld [vmem:[%s294 + $0x28] sm:$0xff]
        %v306 = vld [vmem:[%s294 + $0x30] sm:$0xff]
        %v307 = vld [vmem:[%s294 + $0x38] sm:$0xff]
        %v308 = vld [vmem:[%s294 + $0x40] sm:$0xff]
        %v309 = vld [vmem:[%s294 + $0x48] sm:$0xff]
        %v310 = vld [vmem:[%s294 + $0x50] sm:$0xff]
        %v311 = vld [vmem:[%s294 + $0x58] sm:$0xff]
        %v312 = vld [vmem:[%s294 + $0x60] sm:$0xff]
        %v313 = vld [vmem:[%s294 + $0x68] sm:$0xff]
        %v314 = vld [vmem:[%s294 + $0x70] sm:$0xff]
        %v315 = vld [vmem:[%s294 + $0x78] sm:$0xff]
        %v316 = vld [vmem:[%s1] sm:$0xff]
        %v317 = vld [vmem:[%s1 + $0x8] sm:$0xff]
        %v318 = vld [vmem:[%s1 + $0x10] sm:$0xff]
        %v319 = vld [vmem:[%s1 + $0x18] sm:$0xff]
        %v320 = vld [vmem:[%s2] sm:$0x1]
        %v322 = vlaneseq
        %v323 = vshrl.u32 %v322, 7
        %v324 = vsub.s32 0, %v323
        %v325 = vrot.slane %v320, %v324
        %vm327 = vcmask 261120
        %v329 = vsel %vm327, %v300, 0
        %v332 = vsel %vm327, %v301, 0
        %v335 = vsel %vm327, %v302, 0
        %v338 = vsel %vm327, %v303, 0
        %v341 = vsel %vm327, %v304, 0
        %v344 = vsel %vm327, %v305, 0
        %v347 = vsel %vm327, %v306, 0
        %v350 = vsel %vm327, %v307, 0
        %v353 = vsel %vm327, %v308, 0
        %v356 = vsel %vm327, %v309, 0
        %v359 = vsel %vm327, %v310, 0
        %v362 = vsel %vm327, %v311, 0
        %v365 = vsel %vm327, %v312, 0
        %v368 = vsel %vm327, %v313, 0
        %v371 = vsel %vm327, %v314, 0
        %v374 = vsel %vm327, %v315, 0
        %376 = vmatprep.subr.mxu0 0.0
        %377 = vmatpush1.msra.mxu0 %v316
        %378 = vmatprep.subr.mxu0 0.0
        %379 = vmatpush1.msra.mxu0 %v317
        %380 = vmatprep.subr.mxu0 0.0
        %381 = vmatpush1.msra.mxu0 %v318
        %382 = vmatprep.subr.mxu0 0.0
        %383 = vmatpush1.msra.mxu0 %v319
        %384 = vmatprep.subr.mxu0 0.0
        %385 = vmatpush1.msra.mxu0 0.0
        %386 = vmatprep.subr.mxu0 0.0
        %387 = vmatpush1.msra.mxu0 0.0
        %388 = vmatprep.subr.mxu0 0.0
        %389 = vmatpush1.msra.mxu0 0.0
        %390 = vmatprep.subr.mxu0 0.0
        %391 = vmatpush1.msra.mxu0 0.0
        %392 = vmatprep.subr.mxu0 0.0
        %393 = vmatpush1.msra.mxu0 0.0
        %394 = vmatprep.subr.mxu0 0.0
        %395 = vmatpush1.msra.mxu0 0.0
        %396 = vmatprep.subr.mxu0 0.0
        %397 = vmatpush1.msra.mxu0 0.0
        %398 = vmatprep.subr.mxu0 0.0
        %399 = vmatpush1.msra.mxu0 0.0
        %400 = vmatprep.subr.mxu0 0.0
        %401 = vmatpush1.msra.mxu0 0.0
        %402 = vmatprep.subr.mxu0 0.0
        %403 = vmatpush1.msra.mxu0 0.0
        %404 = vmatprep.subr.mxu0 0.0
        %405 = vmatpush1.msra.mxu0 0.0
        %406 = vmatprep.subr.mxu0 0.0
        %407 = vmatpush1.msra.mxu0 0.0
        %408 = vmatprep.subr.mxu0 0.0
        %409 = vmatpush1.msra.mxu0 0.0
        %410 = vmatprep.subr.mxu0 0.0
        %411 = vmatpush1.msra.mxu0 0.0
        %412 = vmatprep.subr.mxu0 0.0
        %413 = vmatpush1.msra.mxu0 0.0
        %414 = vmatprep.subr.mxu0 0.0
        %415 = vmatpush1.msra.mxu0 0.0
        %416 = vmatprep.subr.mxu0 0.0
        %417 = vmatpush1.msra.mxu0 0.0
        %418 = vmatprep.subr.mxu0 0.0
        %419 = vmatpush1.msra.mxu0 0.0
        %420 = vmatprep.subr.mxu0 0.0
        %421 = vmatpush1.msra.mxu0 0.0
        %422 = vmatprep.subr.mxu0 0.0
        %423 = vmatpush1.msra.mxu0 0.0
        %424 = vmatprep.subr.mxu0 0.0
        %425 = vmatpush1.msra.mxu0 0.0
        %426 = vmatprep.subr.mxu0 0.0
        %427 = vmatpush1.msra.mxu0 0.0
        %428 = vmatprep.subr.mxu0 0.0
        %429 = vmatpush1.msra.mxu0 0.0
        %430 = vmatprep.subr.mxu0 0.0
        %431 = vmatpush1.msra.mxu0 0.0
        %432 = vmatprep.subr.mxu0 0.0
        %433 = vmatpush1.msra.mxu0 0.0
        %434 = vmatprep.subr.mxu0 0.0
        %435 = vmatpush1.msra.mxu0 0.0
        %436 = vmatprep.subr.mxu0 0.0
        %437 = vmatpush1.msra.mxu0 0.0
        %438 = vmatprep.subr.mxu0 0.0
        %439 = vmatpush1.msra.mxu0 0.0
        %440 = vmatprep.mubr.f32.mxu0 0.0
        %441 = vmatmul.mubr.f32.gmra.mrb[0].mxu0 %v329
        %v442 = vpop.f32.mrb[0].mxu0
        %v443 = vadd.f32 %v325, %v442
        %v444 = vpop.f32.mrb[0].mxu0
        %445 = vmatprep.mubr.f32.mxu0 0.0
        %446 = vmatmul.mubr.f32.gmra.mrb[0].mxu0 %v332
        %v447 = vpop.f32.mrb[0].mxu0
        %v448 = vadd.f32 %v325, %v447
        %v449 = vpop.f32.mrb[0].mxu0
        %450 = vmatprep.mubr.f32.mxu0 0.0
        %451 = vmatmul.mubr.f32.gmra.mrb[0].mxu0 %v335
        %v452 = vpop.f32.mrb[0].mxu0
        %v453 = vadd.f32 %v325, %v452
        %v454 = vpop.f32.mrb[0].mxu0
        %455 = vmatprep.mubr.f32.mxu0 0.0
        %456 = vmatmul.mubr.f32.gmra.mrb[0].mxu0 %v338
        %v457 = vpop.f32.mrb[0].mxu0
        %v458 = vadd.f32 %v325, %v457
        %v459 = vpop.f32.mrb[0].mxu0
        %460 = vmatprep.mubr.f32.mxu0 0.0
        %461 = vmatmul.mubr.f32.gmra.mrb[0].mxu0 %v341
        %v462 = vpop.f32.mrb[0].mxu0
        %v463 = vadd.f32 %v325, %v462
        %v464 = vpop.f32.mrb[0].mxu0
        %465 = vmatprep.mubr.f32.mxu0 0.0
        %466 = vmatmul.mubr.f32.gmra.mrb[0].mxu0 %v344
        %v467 = vpop.f32.mrb[0].mxu0
        %v468 = vadd.f32 %v325, %v467
        %v469 = vpop.f32.mrb[0].mxu0
        %470 = vmatprep.mubr.f32.mxu0 0.0
        %471 = vmatmul.mubr.f32.gmra.mrb[0].mxu0 %v347
        %v472 = vpop.f32.mrb[0].mxu0
        %v473 = vadd.f32 %v325, %v472
        %v474 = vpop.f32.mrb[0].mxu0
        %475 = vmatprep.mubr.f32.mxu0 0.0
        %476 = vmatmul.mubr.f32.gmra.mrb[0].mxu0 %v350
        %v477 = vpop.f32.mrb[0].mxu0
        %v478 = vadd.f32 %v325, %v477
        %v479 = vpop.f32.mrb[0].mxu0
        %480 = vmatprep.mubr.f32.mxu0 0.0
        %481 = vmatmul.mubr.f32.gmra.mrb[0].mxu0 %v353
        %v482 = vpop.f32.mrb[0].mxu0
        %v483 = vadd.f32 %v325, %v482
        %v484 = vpop.f32.mrb[0].mxu0
        %485 = vmatprep.mubr.f32.mxu0 0.0
        %486 = vmatmul.mubr.f32.gmra.mrb[0].mxu0 %v356
        %v487 = vpop.f32.mrb[0].mxu0
        %v488 = vadd.f32 %v325, %v487
        %v489 = vpop.f32.mrb[0].mxu0
        %490 = vmatprep.mubr.f32.mxu0 0.0
        %491 = vmatmul.mubr.f32.gmra.mrb[0].mxu0 %v359
        %v492 = vpop.f32.mrb[0].mxu0
        %v493 = vadd.f32 %v325, %v492
        %v494 = vpop.f32.mrb[0].mxu0
        %495 = vmatprep.mubr.f32.mxu0 0.0
        %496 = vmatmul.mubr.f32.gmra.mrb[0].mxu0 %v362
        %v497 = vpop.f32.mrb[0].mxu0
        %v498 = vadd.f32 %v325, %v497
        %v499 = vpop.f32.mrb[0].mxu0
        %500 = vmatprep.mubr.f32.mxu0 0.0
        %501 = vmatmul.mubr.f32.gmra.mrb[0].mxu0 %v365
        %v502 = vpop.f32.mrb[0].mxu0
        %v503 = vadd.f32 %v325, %v502
        %v504 = vpop.f32.mrb[0].mxu0
        %505 = vmatprep.mubr.f32.mxu0 0.0
        %506 = vmatmul.mubr.f32.gmra.mrb[0].mxu0 %v368
        %v507 = vpop.f32.mrb[0].mxu0
        %v508 = vadd.f32 %v325, %v507
        %v509 = vpop.f32.mrb[0].mxu0
        %510 = vmatprep.mubr.f32.mxu0 0.0
        %511 = vmatmul.mubr.f32.gmra.mrb[0].mxu0 %v371
        %v512 = vpop.f32.mrb[0].mxu0
        %v513 = vadd.f32 %v325, %v512
        %v514 = vpop.f32.mrb[0].mxu0
        %515 = vmatprep.mubr.f32.mxu0 0.0
        %516 = vmatmul.mubr.f32.gmra.mrb[0].mxu0 %v374
        %v517 = vpop.f32.mrb[0].mxu0
        %v518 = vadd.f32 %v325, %v517
        %v519 = vpop.f32.mrb[0].mxu0
        %520 = vdwg.mxu0
        %v521 = vmul.f32 %v443, 0.1
        %v522 = vmul.f32 %v448, 0.1
        %v523 = vmul.f32 %v453, 0.1
        %v524 = vmul.f32 %v458, 0.1
        %v525 = vmul.f32 %v463, 0.1
        %v526 = vmul.f32 %v468, 0.1
        %v527 = vmul.f32 %v473, 0.1
        %v528 = vmul.f32 %v478, 0.1
        %v529 = vmul.f32 %v483, 0.1
        %v530 = vmul.f32 %v488, 0.1
        %v531 = vmul.f32 %v493, 0.1
        %v532 = vmul.f32 %v498, 0.1
        %v533 = vmul.f32 %v503, 0.1
        %v534 = vmul.f32 %v508, 0.1
        %v535 = vmul.f32 %v513, 0.1
        %v536 = vmul.f32 %v518, 0.1
        %v537 = vmax.f32 %v443, %v521
        %v538 = vmax.f32 %v448, %v522
        %v539 = vmax.f32 %v453, %v523
        %v540 = vmax.f32 %v458, %v524
        %v541 = vmax.f32 %v463, %v525
        %v542 = vmax.f32 %v468, %v526
        %v543 = vmax.f32 %v473, %v527
        %v544 = vmax.f32 %v478, %v528
        %v545 = vmax.f32 %v483, %v529
        %v546 = vmax.f32 %v488, %v530
        %v547 = vmax.f32 %v493, %v531
        %v548 = vmax.f32 %v498, %v532
        %v549 = vmax.f32 %v503, %v533
        %v550 = vmax.f32 %v508, %v534
        %v551 = vmax.f32 %v513, %v535
        %v552 = vmax.f32 %v518, %v536
        %v553 = vld [vmem:[%s3] sm:$0xff]
        %v554 = vld [vmem:[%s3 + $0x8] sm:$0xff]
        %v555 = vld [vmem:[%s3 + $0x10] sm:$0xff]
        %v556 = vld [vmem:[%s3 + $0x18] sm:$0xff]
        %v557 = vld [vmem:[%s3 + $0x20] sm:$0xff]
        %v558 = vld [vmem:[%s3 + $0x28] sm:$0xff]
        %v559 = vld [vmem:[%s3 + $0x30] sm:$0xff]
        %v560 = vld [vmem:[%s3 + $0x38] sm:$0xff]
        %v561 = vld [vmem:[%s3 + $0x40] sm:$0xff]
        %v562 = vld [vmem:[%s3 + $0x48] sm:$0xff]
        %v563 = vld [vmem:[%s3 + $0x50] sm:$0xff]
        %v564 = vld [vmem:[%s3 + $0x58] sm:$0xff]
        %v565 = vld [vmem:[%s3 + $0x60] sm:$0xff]
        %v566 = vld [vmem:[%s3 + $0x68] sm:$0xff]
        %v567 = vld [vmem:[%s3 + $0x70] sm:$0xff]
        %v568 = vld [vmem:[%s3 + $0x78] sm:$0xff]
        %v569 = vld [vmem:[%s4] sm:$0x1]
        %v571 = vlaneseq
        %v572 = vshrl.u32 %v571, 7
        %v573 = vsub.s32 0, %v572
        %v574 = vrot.slane %v569, %v573
        %576 = vmatprep.subr.mxu0 0.0
        %577 = vmatpush1.msra.mxu0 %v553
        %578 = vmatprep.subr.mxu0 0.0
        %579 = vmatpush1.msra.mxu0 %v554
        %580 = vmatprep.subr.mxu0 0.0
        %581 = vmatpush1.msra.mxu0 %v555
        %582 = vmatprep.subr.mxu0 0.0
        %583 = vmatpush1.msra.mxu0 %v556
        %584 = vmatprep.subr.mxu0 0.0
        %585 = vmatpush1.msra.mxu0 %v557
        %586 = vmatprep.subr.mxu0 0.0
        %587 = vmatpush1.msra.mxu0 %v558
        %588 = vmatprep.subr.mxu0 0.0
        %589 = vmatpush1.msra.mxu0 %v559
        %590 = vmatprep.subr.mxu0 0.0
        %591 = vmatpush1.msra.mxu0 %v560
        %592 = vmatprep.subr.mxu0 0.0
        %593 = vmatpush1.msra.mxu0 %v561
        %594 = vmatprep.subr.mxu0 0.0
        %595 = vmatpush1.msra.mxu0 %v562
        %596 = vmatprep.subr.mxu0 0.0
        %597 = vmatpush1.msra.mxu0 %v563
        %598 = vmatprep.subr.mxu0 0.0
        %599 = vmatpush1.msra.mxu0 %v564
        %600 = vmatprep.subr.mxu0 0.0
        %601 = vmatpush1.msra.mxu0 %v565
        %602 = vmatprep.subr.mxu0 0.0
        %603 = vmatpush1.msra.mxu0 %v566
        %604 = vmatprep.subr.mxu0 0.0
        %605 = vmatpush1.msra.mxu0 %v567
        %606 = vmatprep.subr.mxu0 0.0
        %607 = vmatpush1.msra.mxu0 %v568
        %608 = vmatprep.subr.mxu0 0.0
        %609 = vmatpush1.msra.mxu0 0.0
        %610 = vmatprep.subr.mxu0 0.0
        %611 = vmatpush1.msra.mxu0 0.0
        %612 = vmatprep.subr.mxu0 0.0
        %613 = vmatpush1.msra.mxu0 0.0
        %614 = vmatprep.subr.mxu0 0.0
        %615 = vmatpush1.msra.mxu0 0.0
        %616 = vmatprep.subr.mxu0 0.0
        %617 = vmatpush1.msra.mxu0 0.0
        %618 = vmatprep.subr.mxu0 0.0
        %619 = vmatpush1.msra.mxu0 0.0
        %620 = vmatprep.subr.mxu0 0.0
        %621 = vmatpush1.msra.mxu0 0.0
        %622 = vmatprep.subr.mxu0 0.0
        %623 = vmatpush1.msra.mxu0 0.0
        %624 = vmatprep.subr.mxu0 0.0
        %625 = vmatpush1.msra.mxu0 0.0
        %626 = vmatprep.subr.mxu0 0.0
        %627 = vmatpush1.msra.mxu0 0.0
        %628 = vmatprep.subr.mxu0 0.0
        %629 = vmatpush1.msra.mxu0 0.0
        %630 = vmatprep.subr.mxu0 0.0
        %631 = vmatpush1.msra.mxu0 0.0
        %632 = vmatprep.subr.mxu0 0.0
        %633 = vmatpush1.msra.mxu0 0.0
        %634 = vmatprep.subr.mxu0 0.0
        %635 = vmatpush1.msra.mxu0 0.0
        %636 = vmatprep.subr.mxu0 0.0
        %637 = vmatpush1.msra.mxu0 0.0
        %638 = vmatprep.subr.mxu0 0.0
        %639 = vmatpush1.msra.mxu0 0.0
        %640 = vmatprep.mubr.f32.mxu0 0.0
        %641 = vmatmul.mubr.f32.gmra.mrb[0].mxu0 %v537
        %v642 = vpop.f32.mrb[0].mxu0
        %v643 = vadd.f32 %v574, %v642
        %v644 = vpop.f32.mrb[0].mxu0
        %645 = vmatprep.mubr.f32.mxu0 0.0
        %646 = vmatmul.mubr.f32.gmra.mrb[0].mxu0 %v538
        %v647 = vpop.f32.mrb[0].mxu0
        %v648 = vadd.f32 %v574, %v647
        %v649 = vpop.f32.mrb[0].mxu0
        %650 = vmatprep.mubr.f32.mxu0 0.0
        %651 = vmatmul.mubr.f32.gmra.mrb[0].mxu0 %v539
        %v652 = vpop.f32.mrb[0].mxu0
        %v653 = vadd.f32 %v574, %v652
        %v654 = vpop.f32.mrb[0].mxu0
        %655 = vmatprep.mubr.f32.mxu0 0.0
        %656 = vmatmul.mubr.f32.gmra.mrb[0].mxu0 %v540
        %v657 = vpop.f32.mrb[0].mxu0
        %v658 = vadd.f32 %v574, %v657
        %v659 = vpop.f32.mrb[0].mxu0
        %660 = vmatprep.mubr.f32.mxu0 0.0
        %661 = vmatmul.mubr.f32.gmra.mrb[0].mxu0 %v541
        %v662 = vpop.f32.mrb[0].mxu0
        %v663 = vadd.f32 %v574, %v662
        %v664 = vpop.f32.mrb[0].mxu0
        %665 = vmatprep.mubr.f32.mxu0 0.0
        %666 = vmatmul.mubr.f32.gmra.mrb[0].mxu0 %v542
        %v667 = vpop.f32.mrb[0].mxu0
        %v668 = vadd.f32 %v574, %v667
        %v669 = vpop.f32.mrb[0].mxu0
        %670 = vmatprep.mubr.f32.mxu0 0.0
        %671 = vmatmul.mubr.f32.gmra.mrb[0].mxu0 %v543
        %v672 = vpop.f32.mrb[0].mxu0
        %v673 = vadd.f32 %v574, %v672
        %v674 = vpop.f32.mrb[0].mxu0
        %675 = vmatprep.mubr.f32.mxu0 0.0
        %676 = vmatmul.mubr.f32.gmra.mrb[0].mxu0 %v544
        %v677 = vpop.f32.mrb[0].mxu0
        %v678 = vadd.f32 %v574, %v677
        %v679 = vpop.f32.mrb[0].mxu0
        %680 = vmatprep.mubr.f32.mxu0 0.0
        %681 = vmatmul.mubr.f32.gmra.mrb[0].mxu0 %v545
        %v682 = vpop.f32.mrb[0].mxu0
        %v683 = vadd.f32 %v574, %v682
        %v684 = vpop.f32.mrb[0].mxu0
        %685 = vmatprep.mubr.f32.mxu0 0.0
        %686 = vmatmul.mubr.f32.gmra.mrb[0].mxu0 %v546
        %v687 = vpop.f32.mrb[0].mxu0
        %v688 = vadd.f32 %v574, %v687
        %v689 = vpop.f32.mrb[0].mxu0
        %690 = vmatprep.mubr.f32.mxu0 0.0
        %691 = vmatmul.mubr.f32.gmra.mrb[0].mxu0 %v547
        %v692 = vpop.f32.mrb[0].mxu0
        %v693 = vadd.f32 %v574, %v692
        %v694 = vpop.f32.mrb[0].mxu0
        %695 = vmatprep.mubr.f32.mxu0 0.0
        %696 = vmatmul.mubr.f32.gmra.mrb[0].mxu0 %v548
        %v697 = vpop.f32.mrb[0].mxu0
        %v698 = vadd.f32 %v574, %v697
        %v699 = vpop.f32.mrb[0].mxu0
        %700 = vmatprep.mubr.f32.mxu0 0.0
        %701 = vmatmul.mubr.f32.gmra.mrb[0].mxu0 %v549
        %v702 = vpop.f32.mrb[0].mxu0
        %v703 = vadd.f32 %v574, %v702
        %v704 = vpop.f32.mrb[0].mxu0
        %705 = vmatprep.mubr.f32.mxu0 0.0
        %706 = vmatmul.mubr.f32.gmra.mrb[0].mxu0 %v550
        %v707 = vpop.f32.mrb[0].mxu0
        %v708 = vadd.f32 %v574, %v707
        %v709 = vpop.f32.mrb[0].mxu0
        %710 = vmatprep.mubr.f32.mxu0 0.0
        %711 = vmatmul.mubr.f32.gmra.mrb[0].mxu0 %v551
        %v712 = vpop.f32.mrb[0].mxu0
        %v713 = vadd.f32 %v574, %v712
        %v714 = vpop.f32.mrb[0].mxu0
        %715 = vmatprep.mubr.f32.mxu0 0.0
        %716 = vmatmul.mubr.f32.gmra.mrb[0].mxu0 %v552
        %v717 = vpop.f32.mrb[0].mxu0
        %v718 = vadd.f32 %v574, %v717
        %v719 = vpop.f32.mrb[0].mxu0
        %720 = vdwg.mxu0
        %v721 = vmul.f32 %v643, 0.1
        %v722 = vmul.f32 %v648, 0.1
        %v723 = vmul.f32 %v653, 0.1
        %v724 = vmul.f32 %v658, 0.1
        %v725 = vmul.f32 %v663, 0.1
        %v726 = vmul.f32 %v668, 0.1
        %v727 = vmul.f32 %v673, 0.1
        %v728 = vmul.f32 %v678, 0.1
        %v729 = vmul.f32 %v683, 0.1
        %v730 = vmul.f32 %v688, 0.1
        %v731 = vmul.f32 %v693, 0.1
        %v732 = vmul.f32 %v698, 0.1
        %v733 = vmul.f32 %v703, 0.1
        %v734 = vmul.f32 %v708, 0.1
        %v735 = vmul.f32 %v713, 0.1
        %v736 = vmul.f32 %v718, 0.1
        %v737 = vmax.f32 %v643, %v721
        %v738 = vmax.f32 %v648, %v722
        %v739 = vmax.f32 %v653, %v723
        %v740 = vmax.f32 %v658, %v724
        %v741 = vmax.f32 %v663, %v725
        %v742 = vmax.f32 %v668, %v726
        %v743 = vmax.f32 %v673, %v727
        %v744 = vmax.f32 %v678, %v728
        %v745 = vmax.f32 %v683, %v729
        %v746 = vmax.f32 %v688, %v730
        %v747 = vmax.f32 %v693, %v731
        %v748 = vmax.f32 %v698, %v732
        %v749 = vmax.f32 %v703, %v733
        %v750 = vmax.f32 %v708, %v734
        %v751 = vmax.f32 %v713, %v735
        %v752 = vmax.f32 %v718, %v736
        %v753 = vld [vmem:[%s5] sm:$0xff]
        %754 = vmatprep.subr.mxu0 0.0
        %755 = vmatpush1.xpose.msra.mxu0 %v737
        %756 = vmatprep.subr.mxu0 0.0
        %757 = vmatpush1.xpose.msra.mxu0 %v738
        %758 = vmatprep.subr.mxu0 0.0
        %759 = vmatpush1.xpose.msra.mxu0 %v739
        %760 = vmatprep.subr.mxu0 0.0
        %761 = vmatpush1.xpose.msra.mxu0 %v740
        %762 = vmatprep.subr.mxu0 0.0
        %763 = vmatpush1.xpose.msra.mxu0 %v741
        %764 = vmatprep.subr.mxu0 0.0
        %765 = vmatpush1.xpose.msra.mxu0 %v742
        %766 = vmatprep.subr.mxu0 0.0
        %767 = vmatpush1.xpose.msra.mxu0 %v743
        %768 = vmatprep.subr.mxu0 0.0
        %769 = vmatpush1.xpose.msra.mxu0 %v744
        %770 = vmatprep.subr.mxu0 0.0
        %771 = vmatpush1.xpose.msra.mxu0 %v745
        %772 = vmatprep.subr.mxu0 0.0
        %773 = vmatpush1.xpose.msra.mxu0 %v746
        %774 = vmatprep.subr.mxu0 0.0
        %775 = vmatpush1.xpose.msra.mxu0 %v747
        %776 = vmatprep.subr.mxu0 0.0
        %777 = vmatpush1.xpose.msra.mxu0 %v748
        %778 = vmatprep.subr.mxu0 0.0
        %779 = vmatpush1.xpose.msra.mxu0 %v749
        %780 = vmatprep.subr.mxu0 0.0
        %781 = vmatpush1.xpose.msra.mxu0 %v750
        %782 = vmatprep.subr.mxu0 0.0
        %783 = vmatpush1.xpose.msra.mxu0 %v751
        %784 = vmatprep.subr.mxu0 0.0
        %785 = vmatpush1.xpose.msra.mxu0 %v752
        %786 = vmatprep.subr.mxu0 0.0
        %787 = vmatpush1.xpose.msra.mxu0 0.0
        %788 = vmatprep.subr.mxu0 0.0
        %789 = vmatpush1.xpose.msra.mxu0 0.0
        %790 = vmatprep.subr.mxu0 0.0
        %791 = vmatpush1.xpose.msra.mxu0 0.0
        %792 = vmatprep.subr.mxu0 0.0
        %793 = vmatpush1.xpose.msra.mxu0 0.0
        %794 = vmatprep.subr.mxu0 0.0
        %795 = vmatpush1.xpose.msra.mxu0 0.0
        %796 = vmatprep.subr.mxu0 0.0
        %797 = vmatpush1.xpose.msra.mxu0 0.0
        %798 = vmatprep.subr.mxu0 0.0
        %799 = vmatpush1.xpose.msra.mxu0 0.0
        %800 = vmatprep.subr.mxu0 0.0
        %801 = vmatpush1.xpose.msra.mxu0 0.0
        %802 = vmatprep.subr.mxu0 0.0
        %803 = vmatpush1.xpose.msra.mxu0 0.0
        %804 = vmatprep.subr.mxu0 0.0
        %805 = vmatpush1.xpose.msra.mxu0 0.0
        %806 = vmatprep.subr.mxu0 0.0
        %807 = vmatpush1.xpose.msra.mxu0 0.0
        %808 = vmatprep.subr.mxu0 0.0
        %809 = vmatpush1.xpose.msra.mxu0 0.0
        %810 = vmatprep.subr.mxu0 0.0
        %811 = vmatpush1.xpose.msra.mxu0 0.0
        %812 = vmatprep.subr.mxu0 0.0
        %813 = vmatpush1.xpose.msra.mxu0 0.0
        %814 = vmatprep.subr.mxu0 0.0
        %815 = vmatpush1.xpose.msra.mxu0 0.0
        %816 = vmatprep.subr.mxu0 0.0
        %817 = vmatpush1.xpose.msra.mxu0 0.0
        %818 = vmatprep.mubr.f32.mxu0 0.0
        %819 = vmatmul.mubr.f32.gmra.mrb[0].mxu0 %v753
        %v820 = vpop.f32.mrb[0].mxu0
        %v821 = vadd.f32 0.0, %v820
        %v822 = vpop.f32.mrb[0].mxu0
        %823 = vdwg.mxu0
        %v824 = vld [vmem:[#allocation2] sm:$0x1]
        %826 = vset.pattern.permute.xlu0 0
        %827 = vperm.xlu0 %826, %v824
        %v828 = vpop.permute.xlu0 %827
        %v830 = vlaneseq
        %v831 = vshrl.u32 %v830, 7
        %v832 = vsub.s32 0, %v831
        %v833 = vrot.slane %v828, %v832
        %v834 = vadd.f32 %v821, %v833
        %v835 = vmul.f32 %v834, 0.5
        %v836 = vtanh.pop %v835
        %v837 = vadd.f32 %v836, 1.0
        %v838 = vmul.f32 %v837, 0.5
        %839 = vst [vmem:[%s285] sm:$0x1] %v838
        %s840 = sand.u32 %s183, 1
        %s841 = scalar_lea.sflag [#allocation4], %s840
        %s842 = sand.u32 %s183, 1
        %s843 = scalar_lea.vmem [#allocation3], %s842
        // Predicated region
        $region49: #{tpu_custom_call.1} parent=47 // pred_check
          %p844 = pneg %p193
        $region50: #{tpu_custom_call.1} parent=47 // pred_check_branch
          %846 = sbr.rel (%p844) target = $region52
        $region51: #{tpu_custom_call.1} parent=47 // pred_region
          %s848 = ssub.s32 16, 16
          %849 = vsyncadd %s841, %s848
          %s850 = smul.addr %s23, 16
          %s851 = scalar_lea.hbm %s7, %s850
          %s853 = sshll.u32 %s843, 4
          %s854 = int_to_ptr.vmem [resolvable:$true] %s853
          %856 = dma.vmem_to_hbm [thread:$0]  %s854, 16, %s851, %s841
        $region52: #{tpu_custom_call.1} parent=47 // pred_fallthru
          _
      $region48: #{tpu_custom_call.1} parent=5 // pred_fallthru
        _
      %p857 = scmp.le.s32.totalorder 2, %s18
      // Predicated region
      $region53: #{tpu_custom_call.1} parent=5 // pred_check
        %p858 = pneg %p857
      $region54: #{tpu_custom_call.1} parent=5 // pred_check_branch
        %860 = sbr.rel (%p858) target = $region56
      $region55: #{tpu_custom_call.1} parent=5 // pred_region
        %s861 = ssub.s32 %s18, 2
        // Predicated region
        $region57: #{tpu_custom_call.1} parent=55 // pred_check
          %p862 = pneg %p199
        $region58: #{tpu_custom_call.1} parent=55 // pred_check_branch
          %864 = sbr.rel (%p862) target = $region60
        $region59: #{tpu_custom_call.1} parent=55 // pred_region
          %s865 = sand.u32 %s184, 1
          %s866 = scalar_lea.sflag [#allocation4], %s865
          %s867 = sand.u32 %s184, 1
          %s868 = scalar_lea.vmem [#allocation3], %s867
          %869 = dma.done %s866, 16
        $region60: #{tpu_custom_call.1} parent=55 // pred_fallthru
          _
      $region56: #{tpu_custom_call.1} parent=5 // pred_fallthru
        _
    $region6: #{tpu_custom_call.1} parent=1 // loop_footer
      %s22 = sadd.s32 1, %s18
    $region7: #{tpu_custom_call.1} parent=1 // loop_footer_branch
      %17 = sbr.rel target = $region3
    $region8: #{tpu_custom_call.1} parent=1 // loop_exit
      _
    %870 = vsyncpa [#allocation4], 1
    %s871 = scalar_lea.sflag [#allocation4], 1
    %872 = vsyncpa %s871, 1

</llo_original>
